<compile_context>
chip_gen: v7x
topology: tpu7x:2x2x1
jax: 0.10.0
libtpu: 0.0.40
codegen_flags: <defaults>
</compile_context>

<pallas_src>
import functools

import jax
import jax.numpy as jnp
from jax.experimental import pallas as pl
from jax.experimental.pallas import tpu as pltpu


_LANE = 128


def _round_up(x, m):
    return ((x + m - 1) // m) * m


@functools.lru_cache(maxsize=None)
def _vmem_config():
    """(budget_bytes, vmem_limit_bytes) — generation aware, conservative fallback."""
    vmem_cap = 64 * 1024 * 1024  # conservative: v7x per-TensorCore VMEM
    try:
        info = pltpu.get_tpu_info()
        cap = getattr(info, "vmem_capacity_bytes", None)
        if cap:
            vmem_cap = int(cap)
    except Exception:
        pass
    # ~3/4 of physical, with headroom: 48 MiB on 64 MiB (v7x), 96 MiB on 128 MiB (v5e/v6e).
    limit = min(vmem_cap * 3 // 4, vmem_cap - (8 << 20))
    limit = max(limit, 32 << 20)
    budget = limit // 2
    return budget, limit


@functools.lru_cache(maxsize=None)
def _num_shards():
    """Leading 'parallel' grid axis: 2 only when >1 TensorCore is detectable (v7x)."""
    try:
        info = pltpu.get_tpu_info()
        for attr in ("num_tensorcores", "tensorcore_count", "num_cores", "core_count"):
            v = getattr(info, attr, None)
            if isinstance(v, int) and v >= 1:
                return min(2, v)
    except Exception:
        pass
    return 1  # v5e/v6e default: a 2nd shard would be a pure-overhead serial loop


def _pick_tile_n(n, per_row_vmem_bytes, vmem_budget_bytes):
    """Largest row tile whose VMEM footprint fits the budget (no fixed row cap,
    so small class counts get big blocks and per-grid-step overhead amortizes)."""
    tile = vmem_budget_bytes // max(per_row_vmem_bytes, 1)
    tile = (tile // _LANE) * _LANE
    if tile < _LANE:
        tile = _LANE
    if tile >= n:
        return max(n, 1)  # one full-height block (always a legal BlockSpec)
    return tile


# ---------------------------------------------------------------------------
# infonce path: softmax cross-entropy (sum) + "correct / count" statistic
# ---------------------------------------------------------------------------
def _infonce_kernel(logits_ref, tgt_ref, ce_ref, corr_ref, ce_smem, corr_smem,
                    *, n, tile_n, steps):
    s = pl.program_id(0)   # shard (parallel axis; >1 only on multi-TensorCore chips)
    i = pl.program_id(1)   # reduction step within the shard

    @pl.when(i == 0)
    def _():
        ce_smem[0] = jnp.float32(0.0)
        corr_smem[0] = jnp.int32(0)

    blk = s * steps + i  # un-clamped block id (clamped duplicates fail the mask below)
    rows = blk * tile_n + jax.lax.broadcasted_iota(jnp.int32, (tile_n, 1), 0)
    valid = rows < n     # (tile_n, 1) — narrow, cheap; full-tile pre-masking removed

    # logits in native dtype; f32 upcast stays in-register (no extra HBM pass).
    x = logits_ref[...].astype(jnp.float32)     # (tile_n, C)
    t = tgt_ref[...]                            # (tile_n, 1) int32 class indices

    # numerically stable log-sum-exp per row
    m = jnp.max(x, axis=-1, keepdims=True)
    lse = m + jnp.log(jnp.sum(jnp.exp(x - m), axis=-1, keepdims=True))

    # logits[row, target[row]] without gather: (1, C) iota broadcast vs (tile_n, 1) t
    cols = jax.lax.broadcasted_iota(jnp.int32, (1, x.shape[-1]), 1)
    picked = jnp.sum(jnp.where(cols == t, x, 0.0), axis=-1, keepdims=True)

    # correct = #(argmax==0 & argmin!=0); first-occurrence tie rule => compare col 0
    mn = jnp.min(x, axis=-1, keepdims=True)
    good = jnp.logical_and(x[:, 0:1] == m, x[:, 0:1] != mn)

    # Masks only at the (tile_n, 1) accumulation points: jnp.where is a true
    # select, so NaN/garbage from padded / duplicated blocks is discarded here.
    ce_smem[0] += jnp.sum(jnp.where(valid, lse - picked, 0.0))
    corr_smem[0] += jnp.sum(jnp.logical_and(valid, good).astype(jnp.int32))

    @pl.when(i == steps - 1)
    def _():
        ce_ref[0, 0] = ce_smem[0]
        corr_ref[0, 0] = corr_smem[0]


def infonce_loss_pallas(logits, target, *, tile_n=None):
    n, c = logits.shape
    num_shards = _num_shards()
    budget, vmem_limit = _vmem_config()

    if tile_n is None:
        c_pad = _round_up(c, _LANE)
        per_row = (2 * c_pad * jnp.dtype(logits.dtype).itemsize   # double-buffered logits
                   + 2 * _LANE * 4                                # (tile,1) i32 target, lane-padded, 2 bufs
                   + 4 * c_pad * 4)                               # ~4 f32 full-width temporaries
        tile_n = _pick_tile_n(n, per_row, budget)

    total_blocks = max(1, pl.cdiv(n, tile_n))
    steps = pl.cdiv(total_blocks, num_shards)

    def in_map(s, i):
        # clamp: padded trailing steps re-read the last block; their rows fail the
        # in-kernel `valid` mask so they contribute nothing.
        return (jnp.minimum(s * steps + i, total_blocks - 1), 0)

    out_map = lambda s, i: (s, 0)
    kernel = functools.partial(_infonce_kernel, n=n, tile_n=tile_n, steps=steps)

    ce_parts, corr_parts = pl.pallas_call(
        kernel,
        out_shape=(jax.ShapeDtypeStruct((num_shards, 1), jnp.float32),
                   jax.ShapeDtypeStruct((num_shards, 1), jnp.int32)),
        grid_spec=pltpu.PrefetchScalarGridSpec(
            num_scalar_prefetch=0,
            grid=(num_shards, steps),
            in_specs=[
                pl.BlockSpec((tile_n, c), in_map),   # logits, native dtype
                pl.BlockSpec((tile_n, 1), in_map),   # class indices, int32
                # TODO(synk): a lane-dense (1, n) target layout would avoid the
                # 128x lane-padded (tile_n, 1) buffer; needs an in-kernel transpose.
            ],
            out_specs=(
                pl.BlockSpec((1, 1), out_map, memory_space=pltpu.SMEM),
                pl.BlockSpec((1, 1), out_map, memory_space=pltpu.SMEM),
            ),
            scratch_shapes=[
                pltpu.SMEM((1,), jnp.float32),   # CE scalar accumulator
                pltpu.SMEM((1,), jnp.int32),     # correct-count scalar accumulator
            ],
        ),
        compiler_params=pltpu.CompilerParams(
            dimension_semantics=("parallel", "arbitrary"),
            vmem_limit_bytes=vmem_limit,
        ),
    )(logits, target.astype(jnp.int32).reshape(n, 1))

    sample_size = n                                       # target.numel()
    loss = jnp.sum(ce_parts) / jnp.float32(sample_size)   # 'sum' reduction / numel
    correct = jnp.sum(corr_parts)                         # jnp scalar — stays on device
    return loss, sample_size, correct, float(n)


# ---------------------------------------------------------------------------
# non-infonce path: BCE-with-logits (sum) + sample_size = target.long().sum()
# ---------------------------------------------------------------------------
def _bce_kernel(logits_ref, tgt_ref, bce_ref, ss_ref, bce_smem, ss_smem,
                *, n, tile_n, steps):
    s = pl.program_id(0)
    i = pl.program_id(1)

    @pl.when(i == 0)
    def _():
        bce_smem[0] = jnp.float32(0.0)
        ss_smem[0] = jnp.int32(0)

    blk = s * steps + i
    rows = blk * tile_n + jax.lax.broadcasted_iota(jnp.int32, (tile_n, 1), 0)
    valid = rows < n

    x = logits_ref[...].astype(jnp.float32)   # native dtype streamed, f32 in-register
    y = tgt_ref[...].astype(jnp.float32)      # native (f32/bf16/int8) streamed

    # stable BCE-with-logits: max(x,0) - x*y + log1p(exp(-|x|))
    # TODO(synk): on v7x this path may flip to EUP-bound; a bf16 softplus would help there.
    per = jnp.maximum(x, 0.0) - x * y + jnp.log1p(jnp.exp(-jnp.abs(x)))

    # Reduce each row first, then mask only the (tile_n, 1) row sums (select, so
    # garbage in padded rows is discarded before it reaches the scalars).
    row_bce = jnp.sum(per, axis=-1, keepdims=True)
    row_cnt = jnp.sum(tgt_ref[...].astype(jnp.int32), axis=-1, keepdims=True)  # target.long()
    bce_smem[0] += jnp.sum(jnp.where(valid, row_bce, 0.0))
    ss_smem[0] += jnp.sum(jnp.where(valid, row_cnt, 0))

    @pl.when(i == steps - 1)
    def _():
        bce_ref[0, 0] = bce_smem[0]
        ss_ref[0, 0] = ss_smem[0]


def bce_loss_pallas(logits, target, *, tile_n=None):
    n, c = logits.shape
    num_shards = _num_shards()
    budget, vmem_limit = _vmem_config()

    # Stream targets in their native dtype (no wrapper-side HBM upcast). Only bools
    # are nudged to int8 to keep the VMEM block a well-supported packed dtype.
    if target.dtype == jnp.bool_:
        target = target.astype(jnp.int8)

    if tile_n is None:
        c_pad = _round_up(c, _LANE)
        l_item = jnp.dtype(logits.dtype).itemsize
        t_item = max(jnp.dtype(target.dtype).itemsize, 1)
        per_row = (2 * c_pad * l_item          # double-buffered logits
                   + 2 * c_pad * t_item        # double-buffered targets
                   + 5 * c_pad * 4)            # ~5 f32 full-width temporaries
        tile_n = _pick_tile_n(n, per_row, budget)

    total_blocks = max(1, pl.cdiv(n, tile_n))
    steps = pl.cdiv(total_blocks, num_shards)

    def in_map(s, i):
        return (jnp.minimum(s * steps + i, total_blocks - 1), 0)

    out_map = lambda s, i: (s, 0)
    kernel = functools.partial(_bce_kernel, n=n, tile_n=tile_n, steps=steps)

    bce_parts, ss_parts = pl.pallas_call(
        kernel,
        out_shape=(jax.ShapeDtypeStruct((num_shards, 1), jnp.float32),
                   jax.ShapeDtypeStruct((num_shards, 1), jnp.int32)),
        grid_spec=pltpu.PrefetchScalarGridSpec(
            num_scalar_prefetch=0,
            grid=(num_shards, steps),
            in_specs=[
                pl.BlockSpec((tile_n, c), in_map),   # logits, native dtype
                pl.BlockSpec((tile_n, c), in_map),   # targets, native dtype
            ],
            out_specs=(
                pl.BlockSpec((1, 1), out_map, memory_space=pltpu.SMEM),
                pl.BlockSpec((1, 1), out_map, memory_space=pltpu.SMEM),
            ),
            scratch_shapes=[
                pltpu.SMEM((1,), jnp.float32),
                pltpu.SMEM((1,), jnp.int32),
            ],
        ),
        compiler_params=pltpu.CompilerParams(
            dimension_semantics=("parallel", "arbitrary"),
            vmem_limit_bytes=vmem_limit,
        ),
    )(logits, target)

    # NOTE: sample_size accumulates in int32 (overflow only if sum(target) > 2^31).
    sample_size = jnp.sum(ss_parts)                # target.long().sum() — jnp scalar
    # NOTE: divides by zero (NaN) if there are no positives — same as the torch reference.
    loss = jnp.sum(bce_parts) / sample_size.astype(jnp.float32)
    return loss, sample_size


# ---------------------------------------------------------------------------
# Module-equivalent wrapper
# ---------------------------------------------------------------------------
class Wav2vecLoss:
    def __init__(self, infonce=False, loss_weights=None, log_keys=None):
        self.infonce = infonce
        self.loss_weights = loss_weights   # TODO(synk): extra_losses path needs a model hook
        self.log_keys = [] if log_keys is None else log_keys

    def __call__(self, logits, target, reduce=True):
        # TODO(synk): reduce=False (per-element 'none' reduction) not implemented in-kernel
        if self.infonce:
            loss, sample_size, correct, count = infonce_loss_pallas(logits, target)
            logging_output = {
                "loss": loss,              # jnp scalars: no device->host sync here
                "ntokens": sample_size,
                "sample_size": sample_size,
                "correct": correct,
                "count": count,
            }
        else:
            loss, sample_size = bce_loss_pallas(logits, target)
            logging_output = {
                "loss": loss,
                "ntokens": sample_size,
                "sample_size": sample_size,
            }
        return loss, sample_size, logging_output


# ---------------------------------------------------------------------------
# Pure-JAX references (correctness check)
# ---------------------------------------------------------------------------
def infonce_ref(logits, target):
    logp = jax.nn.log_softmax(logits.astype(jnp.float32), axis=-1)
    ce = -jnp.take_along_axis(logp, target[:, None].astype(jnp.int32), axis=-1)
    loss = jnp.sum(ce) / logits.shape[0]
    is_max = jnp.argmax(logits, axis=-1) == 0
    is_min = jnp.argmin(logits, axis=-1) == 0
    corr = jnp.sum(is_max.astype(jnp.int32)) - jnp.sum((is_max & is_min).astype(jnp.int32))
    return loss, int(corr)


def bce_ref(logits, target):
    x = logits.astype(jnp.float32)
    y = target.astype(jnp.float32)
    per = jnp.maximum(x, 0.0) - x * y + jnp.log1p(jnp.exp(-jnp.abs(x)))
    ss = jnp.sum(target.astype(jnp.int32))
    return jnp.sum(per) / ss.astype(jnp.float32), int(ss)


if __name__ == "__main__":
    key = jax.random.PRNGKey(0)
    k1, k2, k3, k4, k5 = jax.random.split(key, 5)

    N, C = 20, 8  # N = B*T rows, C candidates/classes; N deliberately not a multiple of 8

    # infonce=True path: logits (N, C) float, target (N,) int class indices
    logits_i = jax.random.normal(k1, (N, C), dtype=jnp.float32)
    target_i = jax.random.randint(k2, (N,), 0, C, dtype=jnp.int32)

    # infonce=False path: logits (N, C) float, target (N, C) {0,1} float
    logits_b = jax.random.normal(k3, (N, C), dtype=jnp.float32)
    target_b = (jax.random.uniform(k4, (N, C)) > 0.5).astype(jnp.float32)

    # --- module-level calls (auto tile size) --------------------------------
    crit_info = Wav2vecLoss(infonce=True)
    loss_i, ss_i, log_i = crit_info(logits_i, target_i)
    crit_bce = Wav2vecLoss(infonce=False)
    loss_b, ss_b, log_b = crit_bce(logits_b, target_b)
    jax.block_until_ready((loss_i, loss_b))

    ref_li, ref_corr = infonce_ref(logits_i, target_i)
    ref_lb, ref_ss = bce_ref(logits_b, target_b)

    assert jnp.allclose(loss_i, ref_li, rtol=1e-5, atol=1e-5), (loss_i, ref_li)
    assert int(log_i["correct"]) == ref_corr, (log_i["correct"], ref_corr)
    assert ss_i == N
    assert jnp.allclose(loss_b, ref_lb, rtol=1e-5, atol=1e-5), (loss_b, ref_lb)
    assert int(ss_b) == ref_ss, (ss_b, ref_ss)

    # --- forced small tile: exercises remainder masking + multi-step grid ----
    loss_i2, _, corr2, _ = infonce_loss_pallas(logits_i, target_i, tile_n=8)
    loss_b2, ss_b2 = bce_loss_pallas(logits_b, target_b, tile_n=8)
    jax.block_until_ready((loss_i2, loss_b2))
    assert jnp.allclose(loss_i2, ref_li, rtol=1e-5, atol=1e-5), (loss_i2, ref_li)
    assert int(corr2) == ref_corr
    assert jnp.allclose(loss_b2, ref_lb, rtol=1e-5, atol=1e-5), (loss_b2, ref_lb)
    assert int(ss_b2) == ref_ss

    # --- native bf16 logits (no wrapper upcast; f32 cast happens in-kernel) --
    logits_bf = jax.random.normal(k5, (16, C), dtype=jnp.bfloat16)
    target_bf = jax.random.randint(k2, (16,), 0, C, dtype=jnp.int32)
    loss_bf, _, corr_bf, _ = infonce_loss_pallas(logits_bf, target_bf)
    jax.block_until_ready(loss_bf)
    ref_lbf, ref_corr_bf = infonce_ref(logits_bf, target_bf)
    assert jnp.allclose(loss_bf, ref_lbf, rtol=1e-4, atol=1e-4), (loss_bf, ref_lbf)
    assert int(corr_bf) == ref_corr_bf

    print("KERNEL_OK")
</pallas_src>

<mosaic_0001>
module attributes {stable_mosaic.version = 11 : i64} {
  func.func @_infonce_kernel(%arg0: i32, %arg1: i32, %arg2: memref<20x8xf32, #tpu.memory_space<vmem>>, %arg3: memref<20x1xi32, #tpu.memory_space<vmem>>, %arg4: memref<1x1xf32, #tpu.memory_space<smem>>, %arg5: memref<1x1xi32, #tpu.memory_space<smem>>, %arg6: memref<1xf32, #tpu.memory_space<smem>>, %arg7: memref<1xi32, #tpu.memory_space<smem>>) attributes {dimension_semantics = [#tpu.dimension_semantics<parallel>, #tpu.dimension_semantics<arbitrary>], iteration_bounds = array<i64: 1, 1>, scalar_prefetch = 0 : i64, scratch_operands = 2 : i64, tpu.core_type = #tpu.core_type<tc>, window_params = [{transform_indices = @transform_0, window_bounds = array<i64: 20, 8>}, {transform_indices = @transform_1, window_bounds = array<i64: 20, 1>}, {transform_indices = @transform_2, window_bounds = array<i64: 1, 1>}, {transform_indices = @transform_3, window_bounds = array<i64: 1, 1>}]} {
    %c0_i32 = arith.constant 0 : i32
    %0 = arith.cmpi eq, %arg1, %c0_i32 : i32
    %1 = arith.extui %0 : i1 to i32
    %c0_i32_0 = arith.constant 0 : i32
    %2 = arith.cmpi ne, %1, %c0_i32_0 : i32
    scf.if %2 {
      %cst_18 = arith.constant 0.000000e+00 : f32
      %c0_19 = arith.constant 0 : index
      %59 = memref.load %arg6[%c0_19] : memref<1xf32, #tpu.memory_space<smem>>
      memref.store %cst_18, %arg6[%c0_19] : memref<1xf32, #tpu.memory_space<smem>>
      %c0_i32_20 = arith.constant 0 : i32
      %c0_21 = arith.constant 0 : index
      %60 = memref.load %arg7[%c0_21] : memref<1xi32, #tpu.memory_space<smem>>
      memref.store %c0_i32_20, %arg7[%c0_21] : memref<1xi32, #tpu.memory_space<smem>>
    } else {
    }
    %c1_i32 = arith.constant 1 : i32
    %3 = arith.muli %arg0, %c1_i32 : i32
    %4 = arith.addi %3, %arg1 : i32
    %c20_i32 = arith.constant 20 : i32
    %5 = arith.muli %4, %c20_i32 : i32
    %6 = tpu.iota {dimensions = array<i32: 0>} : vector<20x1xi32>
    %7 = vector.broadcast %5 : i32 to vector<20x1xi32>
    %8 = arith.addi %7, %6 : vector<20x1xi32>
    %c20_i32_1 = arith.constant 20 : i32
    %9 = vector.broadcast %c20_i32_1 : i32 to vector<20x1xi32>
    %10 = arith.cmpi slt, %8, %9 : vector<20x1xi32>
    %c0 = arith.constant 0 : index
    %c0_2 = arith.constant 0 : index
    %11 = vector.load %arg2[%c0, %c0_2] : memref<20x8xf32, #tpu.memory_space<vmem>>, vector<20x8xf32>
    %c0_3 = arith.constant 0 : index
    %c0_4 = arith.constant 0 : index
    %12 = vector.load %arg3[%c0_3, %c0_4] : memref<20x1xi32, #tpu.memory_space<vmem>>, vector<20x1xi32>
    %cst = arith.constant dense<0xFF800000> : vector<20xf32>
    %13 = vector.multi_reduction <maximumf>, %11, %cst [1] : vector<20x8xf32> to vector<20xf32>
    %14 = vector.shape_cast %13 : vector<20xf32> to vector<20x1xf32>
    %15 = vector.broadcast %14 : vector<20x1xf32> to vector<20x8xf32>
    %16 = arith.subf %11, %15 : vector<20x8xf32>
    %17 = math.exp %16 : vector<20x8xf32>
    %cst_5 = arith.constant dense<0.000000e+00> : vector<20xf32>
    %18 = vector.multi_reduction <add>, %17, %cst_5 [1] : vector<20x8xf32> to vector<20xf32>
    %19 = vector.shape_cast %18 : vector<20xf32> to vector<20x1xf32>
    %20 = math.log %19 : vector<20x1xf32>
    %21 = arith.addf %14, %20 : vector<20x1xf32>
    %22 = tpu.iota {dimensions = array<i32: 1>} : vector<1x8xi32>
    %23 = vector.broadcast %22 : vector<1x8xi32> to vector<20x8xi32>
    %24 = vector.broadcast %12 : vector<20x1xi32> to vector<20x8xi32>
    %25 = arith.cmpi eq, %23, %24 : vector<20x8xi32>
    %cst_6 = arith.constant 0.000000e+00 : f32
    %26 = vector.broadcast %cst_6 : f32 to vector<20x8xf32>
    %27 = arith.select %25, %11, %26 : vector<20x8xi1>, vector<20x8xf32>
    %cst_7 = arith.constant dense<0.000000e+00> : vector<20xf32>
    %28 = vector.multi_reduction <add>, %27, %cst_7 [1] : vector<20x8xf32> to vector<20xf32>
    %29 = vector.shape_cast %28 : vector<20xf32> to vector<20x1xf32>
    %cst_8 = arith.constant dense<0x7F800000> : vector<20xf32>
    %30 = vector.multi_reduction <minimumf>, %11, %cst_8 [1] : vector<20x8xf32> to vector<20xf32>
    %31 = vector.shape_cast %30 : vector<20xf32> to vector<20x1xf32>
    %32 = vector.extract_strided_slice %11 {offsets = [0, 0], sizes = [20, 1], strides = [1, 1]} : vector<20x8xf32> to vector<20x1xf32>
    %33 = arith.cmpf oeq, %32, %14 : vector<20x1xf32>
    %34 = vector.extract_strided_slice %11 {offsets = [0, 0], sizes = [20, 1], strides = [1, 1]} : vector<20x8xf32> to vector<20x1xf32>
    %35 = arith.cmpf one, %34, %31 : vector<20x1xf32>
    %36 = arith.andi %33, %35 : vector<20x1xi1>
    %c0_9 = arith.constant 0 : index
    %37 = memref.load %arg6[%c0_9] : memref<1xf32, #tpu.memory_space<smem>>
    %38 = arith.subf %21, %29 : vector<20x1xf32>
    %cst_10 = arith.constant 0.000000e+00 : f32
    %39 = vector.broadcast %cst_10 : f32 to vector<20x1xf32>
    %40 = arith.select %10, %38, %39 : vector<20x1xi1>, vector<20x1xf32>
    %41 = vector.shape_cast %40 : vector<20x1xf32> to vector<1x20x1xf32>
    %cst_11 = arith.constant dense<0.000000e+00> : vector<1xf32>
    %42 = vector.multi_reduction <add>, %41, %cst_11 [1, 2] : vector<1x20x1xf32> to vector<1xf32>
    %43 = vector.shape_cast %42 : vector<1xf32> to vector<1x1x1xf32>
    %44 = vector.extract %43[0, 0, 0] : f32 from vector<1x1x1xf32>
    %45 = arith.addf %37, %44 : f32
    %c0_12 = arith.constant 0 : index
    %46 = memref.load %arg6[%c0_12] : memref<1xf32, #tpu.memory_space<smem>>
    memref.store %45, %arg6[%c0_12] : memref<1xf32, #tpu.memory_space<smem>>
    %c0_13 = arith.constant 0 : index
    %47 = memref.load %arg7[%c0_13] : memref<1xi32, #tpu.memory_space<smem>>
    %48 = arith.andi %10, %36 : vector<20x1xi1>
    %49 = arith.extui %48 : vector<20x1xi1> to vector<20x1xi32>
    %50 = vector.shape_cast %49 : vector<20x1xi32> to vector<1x20x1xi32>
    %cst_14 = arith.constant dense<0> : vector<1xi32>
    %51 = vector.multi_reduction <add>, %50, %cst_14 [1, 2] : vector<1x20x1xi32> to vector<1xi32>
    %52 = vector.shape_cast %51 : vector<1xi32> to vector<1x1x1xi32>
    %53 = vector.extract %52[0, 0, 0] : i32 from vector<1x1x1xi32>
    %54 = arith.addi %47, %53 : i32
    %c0_15 = arith.constant 0 : index
    %55 = memref.load %arg7[%c0_15] : memref<1xi32, #tpu.memory_space<smem>>
    memref.store %54, %arg7[%c0_15] : memref<1xi32, #tpu.memory_space<smem>>
    %c0_i32_16 = arith.constant 0 : i32
    %56 = arith.cmpi eq, %arg1, %c0_i32_16 : i32
    %57 = arith.extui %56 : i1 to i32
    %c0_i32_17 = arith.constant 0 : i32
    %58 = arith.cmpi ne, %57, %c0_i32_17 : i32
    scf.if %58 {
      %c0_18 = arith.constant 0 : index
      %59 = memref.load %arg6[%c0_18] : memref<1xf32, #tpu.memory_space<smem>>
      %c0_19 = arith.constant 0 : index
      %c0_20 = arith.constant 0 : index
      %60 = memref.load %arg4[%c0_19, %c0_20] : memref<1x1xf32, #tpu.memory_space<smem>>
      memref.store %59, %arg4[%c0_19, %c0_20] : memref<1x1xf32, #tpu.memory_space<smem>>
      %c0_21 = arith.constant 0 : index
      %61 = memref.load %arg7[%c0_21] : memref<1xi32, #tpu.memory_space<smem>>
      %c0_22 = arith.constant 0 : index
      %c0_23 = arith.constant 0 : index
      %62 = memref.load %arg5[%c0_22, %c0_23] : memref<1x1xi32, #tpu.memory_space<smem>>
      memref.store %61, %arg5[%c0_22, %c0_23] : memref<1x1xi32, #tpu.memory_space<smem>>
    } else {
    }
    return
  }
  func.func @transform_0(%arg0: i32, %arg1: i32) -> (i32, i32) {
    %c1_i32 = arith.constant 1 : i32
    %0 = arith.muli %arg0, %c1_i32 : i32
    %1 = arith.addi %0, %arg1 : i32
    %c0_i32 = arith.constant 0 : i32
    %2 = arith.minsi %1, %c0_i32 : i32
    %c0_i32_0 = arith.constant 0 : i32
    %c0_i32_1 = arith.constant 0 : i32
    return %2, %c0_i32_0 : i32, i32
  }
  func.func @transform_1(%arg0: i32, %arg1: i32) -> (i32, i32) {
    %c1_i32 = arith.constant 1 : i32
    %0 = arith.muli %arg0, %c1_i32 : i32
    %1 = arith.addi %0, %arg1 : i32
    %c0_i32 = arith.constant 0 : i32
    %2 = arith.minsi %1, %c0_i32 : i32
    %c0_i32_0 = arith.constant 0 : i32
    %c0_i32_1 = arith.constant 0 : i32
    return %2, %c0_i32_0 : i32, i32
  }
  func.func @transform_2(%arg0: i32, %arg1: i32) -> (i32, i32) {
    %c0_i32 = arith.constant 0 : i32
    %c0_i32_0 = arith.constant 0 : i32
    return %arg0, %c0_i32 : i32, i32
  }
  func.func @transform_3(%arg0: i32, %arg1: i32) -> (i32, i32) {
    %c0_i32 = arith.constant 0 : i32
    %c0_i32_0 = arith.constant 0 : i32
    return %arg0, %c0_i32 : i32, i32
  }
}

</mosaic_0001>

<llo_original>
// kernel: tpu_custom_call.1
$region0: #{tpu_custom_call.1}
  #allocation0 [shape = 'u32[]', space=smem, size = 0x4, offset = 0x4, fixed_abs, tag = 'smem constant byte address 0x4 - core index']
  #allocation1 [shape = 'u32[144,128]{1,0:T(1,128)}', space=vmem, size = 0x12000, scoped, tag = 'internal scratch']
  #allocation2 [shape = 'f32[1]{0:T(128)}', space=smem, size = 0x200, scoped, tag = 'scratch operand']
  #allocation3 [shape = 's32[1]{0:T(128)}', space=smem, size = 0x200, scoped, tag = 'scratch operand']
  %s0 = inlined_call_operand.vmem [shape: f32[20,8], index: 0, kind: input, shape index: {}]
  %s1 = inlined_call_operand.vmem [shape: s32[20,1], index: 1, kind: input, shape index: {}]
  %s2 = inlined_call_operand.hbm [shape: f32[1,1], index: 2, kind: output, shape index: {0}]
  %s3 = inlined_call_operand.hbm [shape: s32[1,1], index: 3, kind: output, shape index: {1}]
  %4 = xla_tuple %s2, %s3
  %s5 = sld [smem:[#allocation0]]
  $region34: #{tpu_custom_call.1} parent=0
    _
  %s7 = ssub.s32 1, %s5
  %s8 = scalar_select 0, %s7, %s5
  $region1: #{tpu_custom_call.1} parent=0
    #allocation4 [shape = 'u8[512]{0}', space=smem, size = 0x200, scoped, tag = 'output window, operand 0, single buffered']
    #allocation5 [shape = 's32[1]{0}', space=sflag, size = 0x4, scoped, tag = 'scoped memory for tpu_custom_call.1']
    #allocation6 [shape = 'u8[512]{0}', space=smem, size = 0x200, scoped, tag = 'output window, operand 1, single buffered']
    #allocation7 [shape = 's32[1]{0}', space=sflag, size = 0x4, scoped, tag = 'scoped memory for tpu_custom_call.1']
    %9 = vsyncpa [#allocation5], 0
    %10 = vsyncpa [#allocation7], 0
    // Predicated region
    $region2: #{tpu_custom_call.1} parent=1 // pred_check
      _
    $region3: #{tpu_custom_call.1} parent=1 // pred_check_branch
      %12 = sbr.rel (0) target = $region5
    $region4: #{tpu_custom_call.1} parent=1 // pred_region
      %s13 = sadd.s32 0, 0
      %p14 = scmp.lt.s32.totalorder %s13, 0
      %s15 = scalar_select %p14, %s13, 0
      %s16 = smul.u32 3, %s15
      %p17 = scmp.lt.s32.totalorder %s16, 2
      %s18 = scalar_select %p17, %s16, 2
      %s19 = smul.addr %s18, 8
      %s20 = scalar_lea.vmem %s0, %s19
      %s21 = sadd.s32 0, 0
      %p22 = scmp.lt.s32.totalorder %s21, 0
      %s23 = scalar_select %p22, %s21, 0
      %s24 = smul.u32 3, %s23
    $region5: #{tpu_custom_call.1} parent=1 // pred_fallthru
      _
    // Predicated region
    $region6: #{tpu_custom_call.1} parent=1 // pred_check
      _
    $region7: #{tpu_custom_call.1} parent=1 // pred_check_branch
      %26 = sbr.rel (0) target = $region9
    $region8: #{tpu_custom_call.1} parent=1 // pred_region
      %s27 = sadd.s32 0, 0
      %p28 = scmp.lt.s32.totalorder %s27, 0
      %s29 = scalar_select %p28, %s27, 0
      %s30 = smul.u32 3, %s29
      %p31 = scmp.lt.s32.totalorder %s30, 2
      %s32 = scalar_select %p31, %s30, 2
      %s33 = smul.addr %s32, 8
      %s34 = scalar_lea.vmem %s1, %s33
      %s35 = sadd.s32 0, 0
      %p36 = scmp.lt.s32.totalorder %s35, 0
      %s37 = scalar_select %p36, %s35, 0
      %s38 = smul.u32 3, %s37
    $region9: #{tpu_custom_call.1} parent=1 // pred_fallthru
      _
    %s39 = sadd.s32 0, 0
    %p40 = scmp.lt.s32.totalorder %s39, 0
    %s41 = scalar_select %p40, %s39, 0
    %s42 = smul.u32 3, %s41
    %p43 = scmp.lt.s32.totalorder %s42, 2
    %s44 = scalar_select %p43, %s42, 2
    %s45 = smul.addr %s44, 8
    %s46 = scalar_lea.vmem %s0, %s45
    %s47 = sadd.s32 0, 0
    %p48 = scmp.lt.s32.totalorder %s47, 0
    %s49 = scalar_select %p48, %s47, 0
    %s50 = smul.u32 3, %s49
    %p51 = scmp.lt.s32.totalorder %s50, 2
    %s52 = scalar_select %p51, %s50, 2
    %s53 = smul.addr %s52, 8
    %s54 = scalar_lea.vmem %s1, %s53
    %s55 = sadd.s32 0, 0
    %p56 = scmp.lt.s32.totalorder %s55, 0
    %s57 = scalar_select %p56, %s55, 0
    %s58 = smul.u32 3, %s57
    %p59 = scmp.lt.s32.totalorder %s58, 2
    %s60 = scalar_select %p59, %s58, 2
    %s61 = smul.addr %s60, 8
    %s62 = scalar_lea.vmem %s0, %s61
    %s63 = sadd.s32 0, 0
    %p64 = scmp.lt.s32.totalorder %s63, 0
    %s65 = scalar_select %p64, %s63, 0
    %s66 = smul.u32 3, %s65
    %s67 = sadd.s32 0, 0
    %p68 = scmp.lt.s32.totalorder %s67, 0
    %s69 = scalar_select %p68, %s67, 0
    %s70 = smul.u32 3, %s69
    %p71 = scmp.lt.s32.totalorder %s70, 2
    %s72 = scalar_select %p71, %s70, 2
    %s73 = smul.addr %s72, 8
    %s74 = scalar_lea.vmem %s1, %s73
    %s75 = sadd.s32 0, 0
    %p76 = scmp.lt.s32.totalorder %s75, 0
    %s77 = scalar_select %p76, %s75, 0
    %s78 = smul.u32 3, %s77
    %p79 = scmp.eq.s32.totalorder 0, 0
    // Predicated region
    $region10: #{tpu_custom_call.1} parent=1 // pred_check
      %p80 = pneg %p79
    $region11: #{tpu_custom_call.1} parent=1 // pred_check_branch
      %82 = sbr.rel (%p80) target = $region13
    $region12: #{tpu_custom_call.1} parent=1 // pred_region
      %s83 = scalar_lea.smem [#allocation2], 0
      %84 = sst [smem:[%s83]] 0.0
      %s85 = scalar_lea.smem [#allocation3], 0
      %86 = sst [smem:[%s85]] 0
    $region13: #{tpu_custom_call.1} parent=1 // pred_fallthru
      _
    %s87 = sadd.s32 0, 0
    %s88 = smul.u32 %s87, 20
    %v89 = vlaneseq
    %v90 = vshrl.u32 %v89, 7
    %v91 = vadd.s32 %v90, 8
    %v92 = vadd.s32 %v90, 16
    %v93 = vstv %s88
    %v94 = vadd.s32 %v93, %v90
    %v95 = vadd.s32 %v93, %v91
    %v96 = vadd.s32 %v93, %v92
    %vm97 = vcmp.lt.s32.totalorder %v94, 20
    %vm98 = vcmp.lt.s32.totalorder %v95, 20
    %vm99 = vcmp.lt.s32.totalorder %v96, 20
    %v100 = vld [vmem:[%s62] sm:$0xff]
    %v101 = vld [vmem:[%s62 + $0x8] sm:$0xff]
    %v102 = vld [vmem:[%s62 + $0x10] sm:$0xf]
    %v103 = vld [vmem:[%s74] sm:$0xff]
    %v104 = vld [vmem:[%s74 + $0x8] sm:$0xff]
    %v105 = vld [vmem:[%s74 + $0x10] sm:$0xf]
    %vm106 = vcmask 64512
    %v107 = vsel %vm106, %v100, -inf
    %108 = vmax.xlane.f32.xlu0 %v107
    %v109 = vpop.xlane.xlu0 %108
    %v110 = vsel %vm106, %v101, -inf
    %111 = vmax.xlane.f32.xlu0 %v110
    %v112 = vpop.xlane.xlu0 %111
    %vm113 = vcmask 60416
    %v114 = vsel %vm113, %v102, -inf
    %115 = vmax.xlane.f32.xlu0 %v114
    %v116 = vpop.xlane.xlu0 %115
    %v117 = vsub.f32 %v100, %v109
    %v118 = vsub.f32 %v101, %v112
    %v119 = vsub.f32 %v102, %v116
    %v120 = vmul.f32 %v117, 1.442695
    %v121 = vpow.pop %v120
    %v122 = vmul.f32 %v118, 1.442695
    %v123 = vpow.pop %v122
    %v124 = vmul.f32 %v119, 1.442695
    %v125 = vpow.pop %v124
    %v126 = vsel %vm106, %v121, 0.0
    %127 = vadd.xlane.f32.xlu0 %v126
    %v128 = vpop.xlane.xlu0 %127
    %v129 = vsel %vm106, %v123, 0.0
    %130 = vadd.xlane.f32.xlu0 %v129
    %v131 = vpop.xlane.xlu0 %130
    %v132 = vsel %vm113, %v125, 0.0
    %133 = vadd.xlane.f32.xlu0 %v132
    %v134 = vpop.xlane.xlu0 %133
    %v135 = vlog2.pop %v128
    %v136 = vmul.f32 %v135, 0.6931472
    %v137 = vlog2.pop %v131
    %v138 = vmul.f32 %v137, 0.6931472
    %v139 = vlog2.pop %v134
    %v140 = vmul.f32 %v139, 0.6931472
    %v141 = vadd.f32 %v109, %v136
    %v142 = vadd.f32 %v112, %v138
    %v143 = vadd.f32 %v116, %v140
    %v144 = vlaneseq
    %v145 = vand.u32 %v144, 127
    %146 = vset.pattern.permute.xlu0 0
    %147 = vperm.xlu0 %146, %v103
    %v148 = vpop.permute.xlu0 %147
    %149 = vset.pattern.permute.xlu0 0
    %150 = vperm.xlu0 %149, %v104
    %v151 = vpop.permute.xlu0 %150
    %152 = vset.pattern.permute.xlu0 0
    %153 = vperm.xlu0 %152, %v105
    %v154 = vpop.permute.xlu0 %153
    %vm155 = vcmp.eq.s32.totalorder %v145, %v148
    %vm156 = vcmp.eq.s32.totalorder %v145, %v151
    %vm157 = vcmp.eq.s32.totalorder %v145, %v154
    %v158 = vsel %vm155, %v100, 0.0
    %v159 = vsel %vm156, %v101, 0.0
    %v160 = vsel %vm157, %v102, 0.0
    %v161 = vsel %vm106, %v158, 0.0
    %162 = vadd.xlane.f32.xlu0 %v161
    %v163 = vpop.xlane.xlu0 %162
    %v164 = vsel %vm106, %v159, 0.0
    %165 = vadd.xlane.f32.xlu0 %v164
    %v166 = vpop.xlane.xlu0 %165
    %v167 = vsel %vm113, %v160, 0.0
    %168 = vadd.xlane.f32.xlu0 %v167
    %v169 = vpop.xlane.xlu0 %168
    %v170 = vsel %vm106, %v100, inf
    %171 = vmin.xlane.f32.xlu0 %v170
    %v172 = vpop.xlane.xlu0 %171
    %v173 = vsel %vm106, %v101, inf
    %174 = vmin.xlane.f32.xlu0 %v173
    %v175 = vpop.xlane.xlu0 %174
    %v176 = vsel %vm113, %v102, inf
    %177 = vmin.xlane.f32.xlu0 %v176
    %v178 = vpop.xlane.xlu0 %177
    %vm179 = vcmp.eq.f32.partialorder %v100, %v109
    %vm180 = vcmp.eq.f32.partialorder %v101, %v112
    %vm181 = vcmp.eq.f32.partialorder %v102, %v116
    %vm182 = vcmp.ne.f32.partialorder %v100, %v172
    %vm183 = vcmp.ne.f32.partialorder %v101, %v175
    %vm184 = vcmp.ne.f32.partialorder %v102, %v178
    %vm185 = vmand %vm179, %vm182
    %vm186 = vmand %vm180, %vm183
    %vm187 = vmand %vm181, %vm184
    %s188 = sld [smem:[#allocation2]]
    %v189 = vsub.f32 %v141, %v163
    %v190 = vsub.f32 %v142, %v166
    %v191 = vsub.f32 %v143, %v169
    %v192 = vsel %vm97, %v189, 0.0
    %v193 = vsel %vm98, %v190, 0.0
    %v194 = vsel %vm99, %v191, 0.0
    %vm195 = vcmask 7168
    %v196 = vsel %vm195, %v192, 0.0
    %v197 = vsel %vm195, %v193, 0.0
    %v198 = vadd.f32 %v196, %v197
    %vm199 = vcmask 3072
    %v200 = vsel %vm199, %v194, 0.0
    %v201 = vadd.f32 %v198, %v200
    %202 = vadd.xlane.f32.xlu0 %v201
    %v203 = vpop.xlane.xlu0 %202
    %v204 = vrot.slane %v203, 4
    %v205 = vadd.f32 %v203, %v204
    %v206 = vrot.slane %v205, 2
    %v207 = vadd.f32 %v205, %v206
    %v208 = vrot.slane %v207, 1
    %v209 = vadd.f32 %v207, %v208
    %s210 = vtos %v209
    %s211 = sadd.f32 %s188, %s210
    %s212 = scalar_lea.smem [#allocation2], 0
    %213 = sst [smem:[%s212]] %s211
    %s214 = sld [smem:[#allocation3]]
    %vm215 = vmand %vm97, %vm185
    %vm216 = vmand %vm98, %vm186
    %vm217 = vmand %vm99, %vm187
    %v218 = vsel %vm215, 1, 0
    %v219 = vsel %vm216, 1, 0
    %v220 = vsel %vm217, 1, 0
    %v221 = vsel %vm195, %v218, 0
    %v222 = vsel %vm195, %v219, 0
    %v223 = vsel %vm199, %v220, 0
    %v224 = vadd.s32 %v221, %v222
    %v225 = vadd.s32 %v224, %v223
    %v226 = vand.u32 %v225, 65535
    %v227 = vshrl.u32 %v225, 16
    %v228 = vcvt.s32.f32 %v226
    %v229 = vcvt.s32.f32 %v227
    %230 = vadd.xlane.f32.xlu0 %v228
    %v231 = vpop.xlane.xlu0 %230
    %232 = vadd.xlane.f32.xlu0 %v229
    %v233 = vpop.xlane.xlu0 %232
    %v234 = vcvt.f32.s32 %v231
    %v235 = vcvt.f32.s32 %v233
    %v236 = vshll.u32 %v235, 16
    %v237 = vadd.s32 %v236, %v234
    %v238 = vrot.slane %v237, 4
    %v239 = vadd.s32 %v237, %v238
    %v240 = vrot.slane %v239, 2
    %v241 = vadd.s32 %v239, %v240
    %v242 = vrot.slane %v241, 1
    %v243 = vadd.s32 %v241, %v242
    %s244 = vtos %v243
    %s245 = sadd.s32 %s214, %s244
    %s246 = scalar_lea.smem [#allocation3], 0
    %247 = sst [smem:[%s246]] %s245
    // Predicated region
    $region14: #{tpu_custom_call.1} parent=1 // pred_check
      %p248 = pneg %p79
    $region15: #{tpu_custom_call.1} parent=1 // pred_check_branch
      %250 = sbr.rel (%p248) target = $region17
    $region16: #{tpu_custom_call.1} parent=1 // pred_region
      %s251 = sld [smem:[#allocation2]]
      %s252 = scalar_lea.smem [#allocation4], 0
      %253 = sst [smem:[%s252]] %s251
      %s254 = sld [smem:[#allocation3]]
      %s255 = scalar_lea.smem [#allocation6], 0
      %256 = sst [smem:[%s255]] %s254
    $region17: #{tpu_custom_call.1} parent=1 // pred_fallthru
      _
    // Predicated region
    $region18: #{tpu_custom_call.1} parent=1 // pred_check
      _
    $region19: #{tpu_custom_call.1} parent=1 // pred_check_branch
      %258 = sbr.rel (0) target = $region21
    $region20: #{tpu_custom_call.1} parent=1 // pred_region
      %s260 = ssub.s32 16, 16
      %261 = vsyncadd [#allocation5], %s260
      %264 = dma.smem_to_hbm [#allocation4], 16, %s2, [#allocation5]
    $region21: #{tpu_custom_call.1} parent=1 // pred_fallthru
      _
    // Predicated region
    $region22: #{tpu_custom_call.1} parent=1 // pred_check
      _
    $region23: #{tpu_custom_call.1} parent=1 // pred_check_branch
      %266 = sbr.rel (0) target = $region25
    $region24: #{tpu_custom_call.1} parent=1 // pred_region
      %s268 = ssub.s32 16, 16
      %269 = vsyncadd [#allocation7], %s268
      %272 = dma.smem_to_hbm [#allocation6], 16, %s3, [#allocation7]
    $region25: #{tpu_custom_call.1} parent=1 // pred_fallthru
      _
    // Predicated region
    $region26: #{tpu_custom_call.1} parent=1 // pred_check
      _
    $region27: #{tpu_custom_call.1} parent=1 // pred_check_branch
      %274 = sbr.rel (0) target = $region29
    $region28: #{tpu_custom_call.1} parent=1 // pred_region
      %275 = dma.done [#allocation5], 16
    $region29: #{tpu_custom_call.1} parent=1 // pred_fallthru
      _
    // Predicated region
    $region30: #{tpu_custom_call.1} parent=1 // pred_check
      _
    $region31: #{tpu_custom_call.1} parent=1 // pred_check_branch
      %277 = sbr.rel (0) target = $region33
    $region32: #{tpu_custom_call.1} parent=1 // pred_region
      %278 = dma.done [#allocation7], 16
    $region33: #{tpu_custom_call.1} parent=1 // pred_fallthru
      _
    %279 = sfence
    %280 = vsyncpa [#allocation5], 1
    %281 = vsyncpa [#allocation7], 1

</llo_original>
